<compile_context>
chip_gen: v7x
topology: tpu7x:2x2x1
jax: 0.10.0
libtpu: 0.0.40
codegen_flags: <defaults>
</compile_context>

<pallas_src>
import functools

import jax
import jax.numpy as jnp
import numpy as np
from jax.experimental import pallas as pl
from jax.experimental.pallas import tpu as pltpu

# ---------------- "config" (deterministic, ESM-like but small) ----------------
VOCAB_SIZE = 33
HIDDEN = 32
MAX_POS = 40
PAD_ID = 1
MASK_ID = 32
LN_EPS = 1e-12
MASK_RATIO_TRAIN = 0.15 * 0.8  # constant from the PyTorch module


def _round_up(x, m):
    return (x + m - 1) // m * m


def esm_embeddings_kernel(ints_ref, flts_ref, wtab_ref, ptab_ref, ln_ref,
                          out_ref, *, hidden, ln_eps):
    ints = ints_ref[...]                       # (TR, 2) int32: [token id, position id]
    flts = flts_ref[...]                       # (TR, 2) f32:   [attn mask, word scale]
    ids = ints[:, 0:1]
    pos = ints[:, 1:2]
    attn = flts[:, 0:1]
    wscale = flts[:, 1:2]                      # 0 for <mask> tokens (masked_fill fused)

    tr = ids.shape[0]
    kw = wtab_ref.shape[0]                     # padded vocab  (multiple of 128)
    kp = ptab_ref.shape[0]                     # padded maxpos (multiple of 128)

    # Exact 0/1 one-hots, cast to the table dtype only at the MXU boundary
    # (bf16 0/1 is exact; f32 accumulation makes the gather bit-exact).
    iota_w = jax.lax.broadcasted_iota(jnp.int32, (tr, kw), 1)
    iota_p = jax.lax.broadcasted_iota(jnp.int32, (tr, kp), 1)
    oh_w = (iota_w == ids).astype(wtab_ref.dtype)
    oh_p = (iota_p == pos).astype(ptab_ref.dtype)

    w_emb = jnp.dot(oh_w, wtab_ref[...], preferred_element_type=jnp.float32)
    p_emb = jnp.dot(oh_p, ptab_ref[...], preferred_element_type=jnp.float32)

    # token-dropout scale (and <mask> zeroing) applied post-matmul in f32
    emb = w_emb * wscale + p_emb               # (TR, Hp); padded H columns are 0

    # LayerNorm over the true hidden size in a single pass
    # (padded columns are exactly zero, so the sums over Hp equal sums over H).
    inv_h = 1.0 / hidden
    mean = jnp.sum(emb, axis=-1, keepdims=True) * inv_h
    var = jnp.maximum(
        jnp.sum(emb * emb, axis=-1, keepdims=True) * inv_h - mean * mean, 0.0)
    inv = jax.lax.rsqrt(var + ln_eps)          # EUP slot
    gamma = ln_ref[0:1, :]
    beta = ln_ref[1:2, :]
    out = ((emb - mean) * inv) * gamma + beta

    # attention-mask multiply
    out_ref[...] = (out * attn).astype(out_ref.dtype)


@functools.partial(jax.jit, static_argnames=("row_tile", "table_dtype", "out_dtype"))
def esm_embeddings(input_ids, attention_mask, word_emb, pos_emb, gamma, beta,
                   *, row_tile=512, table_dtype=jnp.bfloat16,
                   out_dtype=jnp.float32):
    """row_tile=512 is v7x-safe at real ESM sizes; raise to 1024-2048 on v5e/v6e."""
    B, S = input_ids.shape
    V, H = word_emb.shape
    P = pos_emb.shape[0]
    N = B * S

    input_ids = input_ids.astype(jnp.int32)
    attn_f = attention_mask.astype(jnp.float32)

    # ---- wrapper-side prep: trivial O(B*S) cross-row-tile XLA ops ----
    # position ids: cumsum of non-pad mask (same as create_position_ids_from_input_ids)
    not_pad = (input_ids != PAD_ID).astype(jnp.int32)
    position_ids = jnp.cumsum(not_pad, axis=1) * not_pad + PAD_ID
    # NOTE: positions beyond MAX_POS-1 (over-long inputs) gather zeros instead
    # of raising like PyTorch; fully padded rows give NaN exactly like PyTorch.

    # per-batch ESM token-dropout scale, with the <mask> masked_fill folded in
    src_len = jnp.sum(attn_f, axis=1)                                    # (B,)
    is_mask = input_ids == MASK_ID
    mask_ratio_observed = jnp.sum(is_mask.astype(jnp.float32), axis=1) / src_len
    scale_b = (1.0 - MASK_RATIO_TRAIN) / (1.0 - mask_ratio_observed)    # (B,)
    word_scale = jnp.where(is_mask, 0.0, scale_b[:, None])              # (B,S)

    # pack per-row scalars: one int32 (N,2) and one f32 (N,2) array
    ints = jnp.stack([input_ids.reshape(N), position_ids.reshape(N)],
                     axis=-1).astype(jnp.int32)
    flts = jnp.stack([attn_f.reshape(N), word_scale.reshape(N)],
                     axis=-1).astype(jnp.float32)

    # ---- zero-padded, VMEM-resident tables (bf16 for the MXU) ----
    KW = _round_up(V, 128)
    PP = _round_up(P, 128)
    Hp = _round_up(H, 128)
    wtab = jnp.zeros((KW, Hp), table_dtype).at[:V, :H].set(
        word_emb.astype(table_dtype))
    ptab = jnp.zeros((PP, Hp), table_dtype).at[:P, :H].set(
        pos_emb.astype(table_dtype))
    ln_params = jnp.zeros((2, Hp), jnp.float32)
    ln_params = ln_params.at[0, :H].set(gamma.astype(jnp.float32))
    ln_params = ln_params.at[1, :H].set(beta.astype(jnp.float32))

    # ---- row tiling ----
    TR = max(8, min(_round_up(row_tile, 8), _round_up(N, 8)))
    N_pad = _round_up(N, TR)
    if N_pad != N:
        pad = N_pad - N
        ints = jnp.concatenate(
            [ints, jnp.full((pad, 2), PAD_ID, jnp.int32)], axis=0)
        flts = jnp.concatenate(
            [flts, jnp.tile(jnp.array([[0.0, 1.0]], jnp.float32), (pad, 1))],
            axis=0)

    grid = (N_pad // TR,)
    row_i_spec = pl.BlockSpec((TR, 2), lambda i: (i, 0))     # tiled per step
    row_f_spec = pl.BlockSpec((TR, 2), lambda i: (i, 0))
    wtab_spec = pl.BlockSpec((KW, Hp), lambda i: (0, 0))     # resident
    ptab_spec = pl.BlockSpec((PP, Hp), lambda i: (0, 0))     # resident
    ln_spec = pl.BlockSpec((2, Hp), lambda i: (0, 0))        # resident

    kernel = functools.partial(esm_embeddings_kernel, hidden=H, ln_eps=LN_EPS)
    tbytes = jnp.dtype(table_dtype).itemsize
    obytes = jnp.dtype(out_dtype).itemsize
    cost = pl.CostEstimate(
        flops=2 * N_pad * (KW + PP) * Hp + 10 * N_pad * Hp,
        transcendentals=N_pad,
        bytes_accessed=(N_pad * 2 * 4 * 2                    # packed row inputs
                        + (KW + PP) * Hp * tbytes + 2 * Hp * 4
                        + N_pad * Hp * obytes))

    out = pl.pallas_call(
        kernel,
        out_shape=jax.ShapeDtypeStruct((N_pad, Hp), out_dtype),
        grid=grid,
        in_specs=[row_i_spec, row_f_spec, wtab_spec, ptab_spec, ln_spec],
        out_specs=pl.BlockSpec((TR, Hp), lambda i: (i, 0)),
        compiler_params=pltpu.CompilerParams(
            dimension_semantics=("parallel",),               # megacore on v7x
            vmem_limit_bytes=48 * 1024 * 1024),
        cost_estimate=cost,
    )(ints, flts, wtab, ptab, ln_params)

    return out[:N, :H].reshape(B, S, H)


# ---------------- pure-JAX reference (mirrors the PyTorch forward) ----------------
def esm_embeddings_ref(input_ids, attention_mask, word_emb, pos_emb, gamma, beta):
    not_pad = (input_ids != PAD_ID).astype(jnp.int32)
    position_ids = jnp.cumsum(not_pad, axis=1) * not_pad + PAD_ID
    emb = word_emb[input_ids]
    is_mask = input_ids == MASK_ID
    emb = jnp.where(is_mask[..., None], 0.0, emb)
    src_len = attention_mask.sum(-1)
    ratio = is_mask.astype(jnp.float32).sum(-1) / src_len
    emb = emb * ((1.0 - MASK_RATIO_TRAIN) / (1.0 - ratio))[:, None, None]
    emb = emb + pos_emb[position_ids]
    mean = emb.mean(-1, keepdims=True)
    var = ((emb - mean) ** 2).mean(-1, keepdims=True)
    emb = (emb - mean) / jnp.sqrt(var + LN_EPS) * gamma + beta
    return emb * attention_mask[..., None]


if __name__ == "__main__":
    B, S = 2, 8
    key = jax.random.PRNGKey(0)
    k_ids, k_w, k_p, k_g, k_b = jax.random.split(key, 5)

    # attention mask: batch 0 full, batch 1 has two padded trailing positions
    attention_mask = jnp.array(
        [[1, 1, 1, 1, 1, 1, 1, 1],
         [1, 1, 1, 1, 1, 1, 0, 0]], dtype=jnp.float32)

    input_ids = jax.random.randint(k_ids, (B, S), 4, 30, dtype=jnp.int32)
    # sprinkle a couple of <mask> tokens, set padded positions to pad id
    input_ids = input_ids.at[0, 2].set(MASK_ID).at[1, 4].set(MASK_ID)
    input_ids = jnp.where(attention_mask > 0, input_ids, PAD_ID).astype(jnp.int32)

    # parameters (deterministic init; nn.Embedding zeros the padding_idx row)
    word_emb = 0.02 * jax.random.normal(k_w, (VOCAB_SIZE, HIDDEN), jnp.float32)
    word_emb = word_emb.at[PAD_ID].set(0.0)
    pos_emb = 0.02 * jax.random.normal(k_p, (MAX_POS, HIDDEN), jnp.float32)
    pos_emb = pos_emb.at[PAD_ID].set(0.0)
    gamma = 1.0 + 0.01 * jax.random.normal(k_g, (HIDDEN,), jnp.float32)
    beta = 0.01 * jax.random.normal(k_b, (HIDDEN,), jnp.float32)

    # row_tile=8 so the toy shape (B*S=16) exercises a 2-step parallel grid;
    # at real ESM sizes the default row_tile=512 is the v7x-safe choice.
    out = esm_embeddings(input_ids, attention_mask, word_emb, pos_emb, gamma,
                         beta, row_tile=8)
    out = jax.block_until_ready(out)

    # the kernel stores the embedding tables in bf16 (MXU-native).  Because the
    # one-hot gather matmuls are exact and the dropout scale / LN run in f32,
    # validating against a reference built from identically-quantized tables
    # keeps the tight f32 tolerance meaningful.
    word_q = word_emb.astype(jnp.bfloat16).astype(jnp.float32)
    pos_q = pos_emb.astype(jnp.bfloat16).astype(jnp.float32)
    ref = esm_embeddings_ref(input_ids, attention_mask, word_q, pos_q, gamma, beta)
    np.testing.assert_allclose(np.asarray(out), np.asarray(ref), rtol=1e-5, atol=1e-5)

    print("KERNEL_OK")
</pallas_src>

<mosaic_0001>
module attributes {stable_mosaic.version = 11 : i64} {
  func.func @esm_embeddings_kernel(%arg0: i32, %arg1: memref<8x2xi32, #tpu.memory_space<vmem>>, %arg2: memref<8x2xf32, #tpu.memory_space<vmem>>, %arg3: memref<128x128xbf16, #tpu.memory_space<vmem>>, %arg4: memref<128x128xbf16, #tpu.memory_space<vmem>>, %arg5: memref<2x128xf32, #tpu.memory_space<vmem>>, %arg6: memref<8x128xf32, #tpu.memory_space<vmem>>) attributes {dimension_semantics = [#tpu.dimension_semantics<parallel>], iteration_bounds = array<i64: 2>, scalar_prefetch = 0 : i64, scratch_operands = 0 : i64, tpu.core_type = #tpu.core_type<tc>, window_params = [{transform_indices = @transform_0, window_bounds = array<i64: 8, 2>}, {transform_indices = @transform_1, window_bounds = array<i64: 8, 2>}, {pipeline_mode = #tpu.pipeline_mode<synchronous>, transform_indices = @transform_2, window_bounds = array<i64: 128, 128>}, {pipeline_mode = #tpu.pipeline_mode<synchronous>, transform_indices = @transform_3, window_bounds = array<i64: 128, 128>}, {pipeline_mode = #tpu.pipeline_mode<synchronous>, transform_indices = @transform_4, window_bounds = array<i64: 2, 128>}, {transform_indices = @transform_5, window_bounds = array<i64: 8, 128>}]} {
    %c0 = arith.constant 0 : index
    %c0_0 = arith.constant 0 : index
    %0 = vector.load %arg1[%c0, %c0_0] : memref<8x2xi32, #tpu.memory_space<vmem>>, vector<8x2xi32>
    %c0_1 = arith.constant 0 : index
    %c0_2 = arith.constant 0 : index
    %1 = vector.load %arg2[%c0_1, %c0_2] : memref<8x2xf32, #tpu.memory_space<vmem>>, vector<8x2xf32>
    %2 = vector.extract_strided_slice %0 {offsets = [0, 0], sizes = [8, 1], strides = [1, 1]} : vector<8x2xi32> to vector<8x1xi32>
    %3 = vector.extract_strided_slice %0 {offsets = [0, 1], sizes = [8, 1], strides = [1, 1]} : vector<8x2xi32> to vector<8x1xi32>
    %4 = vector.extract_strided_slice %1 {offsets = [0, 0], sizes = [8, 1], strides = [1, 1]} : vector<8x2xf32> to vector<8x1xf32>
    %5 = vector.extract_strided_slice %1 {offsets = [0, 1], sizes = [8, 1], strides = [1, 1]} : vector<8x2xf32> to vector<8x1xf32>
    %6 = tpu.iota {dimensions = array<i32: 1>} : vector<8x128xi32>
    %7 = tpu.iota {dimensions = array<i32: 1>} : vector<8x128xi32>
    %8 = vector.broadcast %2 : vector<8x1xi32> to vector<8x128xi32>
    %9 = arith.cmpi eq, %6, %8 : vector<8x128xi32>
    %10 = arith.extui %9 : vector<8x128xi1> to vector<8x128xi32>
    %11 = arith.sitofp %10 : vector<8x128xi32> to vector<8x128xf32>
    %12 = arith.truncf %11 : vector<8x128xf32> to vector<8x128xbf16>
    %13 = vector.broadcast %3 : vector<8x1xi32> to vector<8x128xi32>
    %14 = arith.cmpi eq, %7, %13 : vector<8x128xi32>
    %15 = arith.extui %14 : vector<8x128xi1> to vector<8x128xi32>
    %16 = arith.sitofp %15 : vector<8x128xi32> to vector<8x128xf32>
    %17 = arith.truncf %16 : vector<8x128xf32> to vector<8x128xbf16>
    %c0_3 = arith.constant 0 : index
    %c0_4 = arith.constant 0 : index
    %18 = vector.load %arg3[%c0_3, %c0_4] : memref<128x128xbf16, #tpu.memory_space<vmem>>, vector<128x128xbf16>
    %cst = arith.constant dense<0.000000e+00> : vector<8x128xf32>
    %19 = tpu.matmul %12, %18, %cst {dimension_numbers = #tpu.dot_dimension_numbers<[1], [0], [0], [1], [0, 0, 1, 1], [], []>} : vector<8x128xbf16>, vector<128x128xbf16>, vector<8x128xf32> -> vector<8x128xf32>
    %c0_5 = arith.constant 0 : index
    %c0_6 = arith.constant 0 : index
    %20 = vector.load %arg4[%c0_5, %c0_6] : memref<128x128xbf16, #tpu.memory_space<vmem>>, vector<128x128xbf16>
    %cst_7 = arith.constant dense<0.000000e+00> : vector<8x128xf32>
    %21 = tpu.matmul %17, %20, %cst_7 {dimension_numbers = #tpu.dot_dimension_numbers<[1], [0], [0], [1], [0, 0, 1, 1], [], []>} : vector<8x128xbf16>, vector<128x128xbf16>, vector<8x128xf32> -> vector<8x128xf32>
    %22 = vector.broadcast %5 : vector<8x1xf32> to vector<8x128xf32>
    %23 = arith.mulf %19, %22 : vector<8x128xf32>
    %24 = arith.addf %23, %21 : vector<8x128xf32>
    %cst_8 = arith.constant dense<0.000000e+00> : vector<8xf32>
    %25 = vector.multi_reduction <add>, %24, %cst_8 [1] : vector<8x128xf32> to vector<8xf32>
    %26 = vector.shape_cast %25 : vector<8xf32> to vector<8x1xf32>
    %cst_9 = arith.constant 3.125000e-02 : f32
    %27 = vector.broadcast %cst_9 : f32 to vector<8x1xf32>
    %28 = arith.mulf %26, %27 : vector<8x1xf32>
    %29 = arith.mulf %24, %24 : vector<8x128xf32>
    %cst_10 = arith.constant dense<0.000000e+00> : vector<8xf32>
    %30 = vector.multi_reduction <add>, %29, %cst_10 [1] : vector<8x128xf32> to vector<8xf32>
    %31 = vector.shape_cast %30 : vector<8xf32> to vector<8x1xf32>
    %cst_11 = arith.constant 3.125000e-02 : f32
    %32 = vector.broadcast %cst_11 : f32 to vector<8x1xf32>
    %33 = arith.mulf %31, %32 : vector<8x1xf32>
    %34 = arith.mulf %28, %28 : vector<8x1xf32>
    %35 = arith.subf %33, %34 : vector<8x1xf32>
    %cst_12 = arith.constant 0.000000e+00 : f32
    %36 = vector.broadcast %cst_12 : f32 to vector<8x1xf32>
    %37 = arith.maximumf %35, %36 : vector<8x1xf32>
    %cst_13 = arith.constant 9.99999996E-13 : f32
    %38 = vector.broadcast %cst_13 : f32 to vector<8x1xf32>
    %39 = arith.addf %37, %38 : vector<8x1xf32>
    %40 = math.rsqrt %39 : vector<8x1xf32>
    %c0_14 = arith.constant 0 : index
    %c0_15 = arith.constant 0 : index
    %41 = vector.load %arg5[%c0_14, %c0_15] : memref<2x128xf32, #tpu.memory_space<vmem>>, vector<1x128xf32>
    %c1 = arith.constant 1 : index
    %c0_16 = arith.constant 0 : index
    %42 = vector.load %arg5[%c1, %c0_16] : memref<2x128xf32, #tpu.memory_space<vmem>>, vector<1x128xf32>
    %43 = vector.broadcast %28 : vector<8x1xf32> to vector<8x128xf32>
    %44 = arith.subf %24, %43 : vector<8x128xf32>
    %45 = vector.broadcast %40 : vector<8x1xf32> to vector<8x128xf32>
    %46 = arith.mulf %44, %45 : vector<8x128xf32>
    %47 = vector.broadcast %41 : vector<1x128xf32> to vector<8x128xf32>
    %48 = arith.mulf %46, %47 : vector<8x128xf32>
    %49 = vector.broadcast %42 : vector<1x128xf32> to vector<8x128xf32>
    %50 = arith.addf %48, %49 : vector<8x128xf32>
    %51 = vector.broadcast %4 : vector<8x1xf32> to vector<8x128xf32>
    %52 = arith.mulf %50, %51 : vector<8x128xf32>
    %c0_17 = arith.constant 0 : index
    %c0_18 = arith.constant 0 : index
    %53 = vector.load %arg6[%c0_17, %c0_18] : memref<8x128xf32, #tpu.memory_space<vmem>>, vector<8x128xf32>
    tpu.vector_store %arg6[%c0_17, %c0_18], %52 {strides = array<i32>} : memref<8x128xf32, #tpu.memory_space<vmem>>, vector<8x128xf32>,
    return
  }
  func.func @transform_0(%arg0: i32) -> (i32, i32) {
    %c0_i32 = arith.constant 0 : i32
    %c0_i32_0 = arith.constant 0 : i32
    return %arg0, %c0_i32 : i32, i32
  }
  func.func @transform_1(%arg0: i32) -> (i32, i32) {
    %c0_i32 = arith.constant 0 : i32
    %c0_i32_0 = arith.constant 0 : i32
    return %arg0, %c0_i32 : i32, i32
  }
  func.func @transform_2(%arg0: i32) -> (i32, i32) {
    %c0_i32 = arith.constant 0 : i32
    %c0_i32_0 = arith.constant 0 : i32
    %c0_i32_1 = arith.constant 0 : i32
    return %c0_i32, %c0_i32_0 : i32, i32
  }
  func.func @transform_3(%arg0: i32) -> (i32, i32) {
    %c0_i32 = arith.constant 0 : i32
    %c0_i32_0 = arith.constant 0 : i32
    %c0_i32_1 = arith.constant 0 : i32
    return %c0_i32, %c0_i32_0 : i32, i32
  }
  func.func @transform_4(%arg0: i32) -> (i32, i32) {
    %c0_i32 = arith.constant 0 : i32
    %c0_i32_0 = arith.constant 0 : i32
    %c0_i32_1 = arith.constant 0 : i32
    return %c0_i32, %c0_i32_0 : i32, i32
  }
  func.func @transform_5(%arg0: i32) -> (i32, i32) {
    %c0_i32 = arith.constant 0 : i32
    %c0_i32_0 = arith.constant 0 : i32
    return %arg0, %c0_i32 : i32, i32
  }
}

</mosaic_0001>

<llo_original>
// kernel: esm_embeddings.1
$region0: #{esm_embeddings.1}
  #allocation0 [shape = 'u32[]', space=smem, size = 0x4, offset = 0x4, fixed_abs, tag = 'smem constant byte address 0x4 - core index']
  #allocation1 [shape = 'u32[144,128]{1,0:T(1,128)}', space=vmem, size = 0x12000, scoped, tag = 'internal scratch']
  %s0 = inlined_call_operand.vmem [shape: s32[16,2], index: 0, kind: input, shape index: {}]
  %s1 = inlined_call_operand.vmem [shape: f32[16,2], index: 1, kind: input, shape index: {}]
  %s2 = inlined_call_operand.vmem [shape: bf16[128,128], index: 2, kind: input, shape index: {}]
  %s3 = inlined_call_operand.vmem [shape: bf16[128,128], index: 3, kind: input, shape index: {}]
  %s4 = inlined_call_operand.vmem [shape: f32[2,128], index: 4, kind: input, shape index: {}]
  %s5 = inlined_call_operand.vmem [shape: f32[16,128], index: 5, kind: output, shape index: {}]
  %s6 = sld [smem:[#allocation0]]
  $region53: #{esm_embeddings.1} parent=0
    _
  %s8 = ssub.s32 1, %s6
  %s9 = scalar_select 0, %s8, %s6
  loop: start=0, step=1, limit=4
  $region2: #{esm_embeddings.1} parent=0 // loop_pre_header
    _
  $region3: #{esm_embeddings.1} parent=0 // loop_header
    %s11 = sphi 0, %s15
    %p12 = scmp.ge.s32.totalorder %s11, 4
    %s21 = sphi 0, %s23
    %s24 = sphi 0, %s21
    %s25 = sphi 0, %s24
    %s41 = sphi 0, %s25
    %s47 = sphi 0, %s49
    %s50 = sphi 0, %s47
    %s51 = sphi 0, %s50
    %s67 = sphi 0, %s51
    %s71 = sphi 0, %s71
    %s73 = sphi 0, %s71
    %s74 = sphi 0, %s73
    %s88 = sphi 0, %s74
    %s92 = sphi 0, %s92
    %s94 = sphi 0, %s92
    %s95 = sphi 0, %s94
    %s109 = sphi 0, %s95
    %s113 = sphi 0, %s113
    %s115 = sphi 0, %s113
    %s116 = sphi 0, %s115
    %s130 = sphi 0, %s116
    %s136 = sphi 0, %s138
    %s139 = sphi 0, %s136
    %s140 = sphi 0, %s139
    %s156 = sphi 0, %s140
  $region4: #{esm_embeddings.1} parent=0 // loop_header_branch
    %14 = sbr.rel (%p12) target = $region8
  $region5: #{esm_embeddings.1} parent=0 // loop_body
    %s16 = ssub.s32 %s11, 1
    %s17 = ssub.s32 %s11, 2
    %s18 = sadd.s32 %s11, 1
    %s19 = ssub.s32 %s11, %s18
    %p20 = scmp.eq.s32.totalorder %s19, 0
    %s22 = sadd.s32 %s21, 1
    %s23 = scalar_select %p20, %s21, %s22
    %p26 = pneg %p20
    %p27 = scmp.eq.s32.totalorder %s11, 1
    %p28 = por %p26, %p27
    %p29 = scmp.ne.s32.totalorder %s21, %s24
    %p30 = scmp.eq.s32.totalorder %s11, 0
    %p31 = por %p29, %p30
    %p32 = scmp.ne.s32.totalorder %s21, %s24
    %p33 = scmp.eq.s32.totalorder %s16, 1
    %p34 = por %p32, %p33
    %p35 = scmp.ne.s32.totalorder %s24, %s25
    %p36 = scmp.eq.s32.totalorder %s16, 0
    %p37 = por %p35, %p36
    %p38 = scmp.ne.s32.totalorder %s24, %s25
    %p39 = scmp.eq.s32.totalorder %s17, 1
    %p40 = por %p38, %p39
    %p42 = scmp.ne.s32.totalorder %s25, %s41
    %p43 = scmp.eq.s32.totalorder %s17, 0
    %p44 = por %p42, %p43
    %s45 = ssub.s32 %s11, %s18
    %p46 = scmp.eq.s32.totalorder %s45, 0
    %s48 = sadd.s32 %s47, 1
    %s49 = scalar_select %p46, %s47, %s48
    %p52 = pneg %p46
    %p53 = scmp.eq.s32.totalorder %s11, 1
    %p54 = por %p52, %p53
    %p55 = scmp.ne.s32.totalorder %s47, %s50
    %p56 = scmp.eq.s32.totalorder %s11, 0
    %p57 = por %p55, %p56
    %p58 = scmp.ne.s32.totalorder %s47, %s50
    %p59 = scmp.eq.s32.totalorder %s16, 1
    %p60 = por %p58, %p59
    %p61 = scmp.ne.s32.totalorder %s50, %s51
    %p62 = scmp.eq.s32.totalorder %s16, 0
    %p63 = por %p61, %p62
    %p64 = scmp.ne.s32.totalorder %s50, %s51
    %p65 = scmp.eq.s32.totalorder %s17, 1
    %p66 = por %p64, %p65
    %p68 = scmp.ne.s32.totalorder %s51, %s67
    %p69 = scmp.eq.s32.totalorder %s17, 0
    %p70 = por %p68, %p69
    %s72 = sadd.s32 %s71, 1
    %p75 = scmp.eq.s32.totalorder %s11, 1
    %p76 = scmp.ne.s32.totalorder %s71, %s73
    %p77 = scmp.eq.s32.totalorder %s11, 0
    %p78 = por %p76, %p77
    %p79 = scmp.ne.s32.totalorder %s71, %s73
    %p80 = scmp.eq.s32.totalorder %s16, 1
    %p81 = por %p79, %p80
    %p82 = scmp.ne.s32.totalorder %s73, %s74
    %p83 = scmp.eq.s32.totalorder %s16, 0
    %p84 = por %p82, %p83
    %p85 = scmp.ne.s32.totalorder %s73, %s74
    %p86 = scmp.eq.s32.totalorder %s17, 1
    %p87 = por %p85, %p86
    %p89 = scmp.ne.s32.totalorder %s74, %s88
    %p90 = scmp.eq.s32.totalorder %s17, 0
    %p91 = por %p89, %p90
    %s93 = sadd.s32 %s92, 1
    %p96 = scmp.eq.s32.totalorder %s11, 1
    %p97 = scmp.ne.s32.totalorder %s92, %s94
    %p98 = scmp.eq.s32.totalorder %s11, 0
    %p99 = por %p97, %p98
    %p100 = scmp.ne.s32.totalorder %s92, %s94
    %p101 = scmp.eq.s32.totalorder %s16, 1
    %p102 = por %p100, %p101
    %p103 = scmp.ne.s32.totalorder %s94, %s95
    %p104 = scmp.eq.s32.totalorder %s16, 0
    %p105 = por %p103, %p104
    %p106 = scmp.ne.s32.totalorder %s94, %s95
    %p107 = scmp.eq.s32.totalorder %s17, 1
    %p108 = por %p106, %p107
    %p110 = scmp.ne.s32.totalorder %s95, %s109
    %p111 = scmp.eq.s32.totalorder %s17, 0
    %p112 = por %p110, %p111
    %s114 = sadd.s32 %s113, 1
    %p117 = scmp.eq.s32.totalorder %s11, 1
    %p118 = scmp.ne.s32.totalorder %s113, %s115
    %p119 = scmp.eq.s32.totalorder %s11, 0
    %p120 = por %p118, %p119
    %p121 = scmp.ne.s32.totalorder %s113, %s115
    %p122 = scmp.eq.s32.totalorder %s16, 1
    %p123 = por %p121, %p122
    %p124 = scmp.ne.s32.totalorder %s115, %s116
    %p125 = scmp.eq.s32.totalorder %s16, 0
    %p126 = por %p124, %p125
    %p127 = scmp.ne.s32.totalorder %s115, %s116
    %p128 = scmp.eq.s32.totalorder %s17, 1
    %p129 = por %p127, %p128
    %p131 = scmp.ne.s32.totalorder %s116, %s130
    %p132 = scmp.eq.s32.totalorder %s17, 0
    %p133 = por %p131, %p132
    %s134 = ssub.s32 %s11, %s18
    %p135 = scmp.eq.s32.totalorder %s134, 0
    %s137 = sadd.s32 %s136, 1
    %s138 = scalar_select %p135, %s136, %s137
    %p141 = pneg %p135
    %p142 = scmp.eq.s32.totalorder %s11, 1
    %p143 = por %p141, %p142
    %p144 = scmp.ne.s32.totalorder %s136, %s139
    %p145 = scmp.eq.s32.totalorder %s11, 0
    %p146 = por %p144, %p145
    %p147 = scmp.ne.s32.totalorder %s136, %s139
    %p148 = scmp.eq.s32.totalorder %s16, 1
    %p149 = por %p147, %p148
    %p150 = scmp.ne.s32.totalorder %s139, %s140
    %p151 = scmp.eq.s32.totalorder %s16, 0
    %p152 = por %p150, %p151
    %p153 = scmp.ne.s32.totalorder %s139, %s140
    %p154 = scmp.eq.s32.totalorder %s17, 1
    %p155 = por %p153, %p154
    %p157 = scmp.ne.s32.totalorder %s140, %s156
    %p158 = scmp.eq.s32.totalorder %s17, 0
    %p159 = por %p157, %p158
    %p160 = scmp.le.s32.totalorder 1, %s11
    %p161 = scmp.lt.s32.totalorder %s11, 3
    %p162 = pnand %p160, %p161
    %p163 = pneg %p162
    // Predicated region
    $region9: #{esm_embeddings.1} parent=5 // pred_check
      _
    $region10: #{esm_embeddings.1} parent=5 // pred_check_branch
      %165 = sbr.rel (%p162) target = $region12
    $region11: #{esm_embeddings.1} parent=5 // pred_region
      %s166 = ssub.s32 %s11, 1
      // Predicated region
      $region13: #{esm_embeddings.1} parent=11 // pred_check
        %p167 = pneg %p84
      $region14: #{esm_embeddings.1} parent=11 // pred_check_branch
        %169 = sbr.rel (%p167) target = $region16
      $region15: #{esm_embeddings.1} parent=11 // pred_region
        _
      $region16: #{esm_embeddings.1} parent=11 // pred_fallthru
        _
      // Predicated region
      $region17: #{esm_embeddings.1} parent=11 // pred_check
        %p170 = pneg %p105
      $region18: #{esm_embeddings.1} parent=11 // pred_check_branch
        %172 = sbr.rel (%p170) target = $region20
      $region19: #{esm_embeddings.1} parent=11 // pred_region
        _
      $region20: #{esm_embeddings.1} parent=11 // pred_fallthru
        _
      // Predicated region
      $region21: #{esm_embeddings.1} parent=11 // pred_check
        %p173 = pneg %p126
      $region22: #{esm_embeddings.1} parent=11 // pred_check_branch
        %175 = sbr.rel (%p173) target = $region24
      $region23: #{esm_embeddings.1} parent=11 // pred_region
        _
      $region24: #{esm_embeddings.1} parent=11 // pred_fallthru
        _
    $region12: #{esm_embeddings.1} parent=5 // pred_fallthru
      _
    %p176 = scmp.lt.s32.totalorder %s11, 2
    // Predicated region
    $region25: #{esm_embeddings.1} parent=5 // pred_check
      %p177 = pneg %p176
    $region26: #{esm_embeddings.1} parent=5 // pred_check_branch
      %179 = sbr.rel (%p177) target = $region28
    $region27: #{esm_embeddings.1} parent=5 // pred_region
      // Predicated region
      $region29: #{esm_embeddings.1} parent=27 // pred_check
        %p180 = pneg %p31
      $region30: #{esm_embeddings.1} parent=27 // pred_check_branch
        %182 = sbr.rel (%p180) target = $region32
      $region31: #{esm_embeddings.1} parent=27 // pred_region
        %p183 = scmp.lt.s32.totalorder %s11, 1
        %s184 = scalar_select %p183, %s11, 1
        %s185 = smul.addr %s184, 8
        %s186 = scalar_lea.vmem %s0, %s185
      $region32: #{esm_embeddings.1} parent=27 // pred_fallthru
        _
      // Predicated region
      $region33: #{esm_embeddings.1} parent=27 // pred_check
        %p187 = pneg %p57
      $region34: #{esm_embeddings.1} parent=27 // pred_check_branch
        %189 = sbr.rel (%p187) target = $region36
      $region35: #{esm_embeddings.1} parent=27 // pred_region
        %p190 = scmp.lt.s32.totalorder %s11, 1
        %s191 = scalar_select %p190, %s11, 1
        %s192 = smul.addr %s191, 8
        %s193 = scalar_lea.vmem %s1, %s192
      $region36: #{esm_embeddings.1} parent=27 // pred_fallthru
        _
    $region28: #{esm_embeddings.1} parent=5 // pred_fallthru
      _
    %p194 = scmp.le.s32.totalorder 1, %s11
    %p195 = scmp.lt.s32.totalorder %s11, 3
    %p196 = pnand %p194, %p195
    %p197 = pneg %p196
    // Predicated region
    $region37: #{esm_embeddings.1} parent=5 // pred_check
      _
    $region38: #{esm_embeddings.1} parent=5 // pred_check_branch
      %199 = sbr.rel (%p196) target = $region40
    $region39: #{esm_embeddings.1} parent=5 // pred_region
      %s200 = ssub.s32 %s11, 1
      %p201 = scmp.lt.s32.totalorder %s16, 1
      %s202 = scalar_select %p201, %s16, 1
      %s203 = smul.addr %s202, 8
      %s204 = scalar_lea.vmem %s0, %s203
      %p205 = pneg %p37
      %p206 = pneg %p34
      %p207 = scmp.lt.s32.totalorder %s16, 1
      %s208 = scalar_select %p207, %s16, 1
      %s209 = smul.addr %s208, 8
      %s210 = scalar_lea.vmem %s1, %s209
      %p211 = pneg %p63
      %p212 = pneg %p60
      %p213 = pneg %p84
      %p214 = pneg %p81
      %p215 = pneg %p105
      %p216 = pneg %p102
      %p217 = pneg %p126
      %p218 = pneg %p123
      %p219 = pneg %p152
      %p220 = pneg %p149
      %p221 = scmp.lt.s32.totalorder %s16, 1
      %s222 = scalar_select %p221, %s16, 1
      %s223 = smul.addr %s222, 8
      %s224 = scalar_lea.vmem %s5, %s223
      %p225 = scmp.lt.s32.totalorder %s16, 1
      %s226 = scalar_select %p225, %s16, 1
      %s227 = smul.addr %s226, 8
      %s228 = scalar_lea.vmem %s0, %s227
      %p229 = scmp.lt.s32.totalorder %s16, 1
      %s230 = scalar_select %p229, %s16, 1
      %s231 = smul.addr %s230, 8
      %s232 = scalar_lea.vmem %s1, %s231
      %p233 = scmp.lt.s32.totalorder %s16, 1
      %s234 = scalar_select %p233, %s16, 1
      %s235 = smul.addr %s234, 8
      %s236 = scalar_lea.vmem %s5, %s235
      %v238 = vld [vmem:[%s228] sm:$0xff]
      %v239 = vld [vmem:[%s232] sm:$0xff]
      %v240 = vlaneseq
      %v241 = vand.u32 %v240, 127
      %242 = vset.pattern.permute.xlu0 0
      %243 = vperm.xlu0 %242, %v238
      %v244 = vpop.permute.xlu0 %243
      %vm245 = vcmp.eq.s32.totalorder %v241, %v244
      %v246 = vsel %vm245, 1, 0
      %v247 = vcvt.s32.f32 %v246
      %v248 = vpack.c.bf16 %v247, %v247
      %249 = vset.pattern.permute.xlu0 1
      %250 = vperm.xlu0 %249, %v238
      %v251 = vpop.permute.xlu0 %250
      %vm252 = vcmp.eq.s32.totalorder %v241, %v251
      %v253 = vsel %vm252, 1, 0
      %v254 = vcvt.s32.f32 %v253
      %v255 = vpack.c.bf16 %v254, %v254
      %v256 = vld [vmem:[%s2] sm:$0xf]
      %v257 = vld [vmem:[%s2 + $0x4] sm:$0xf]
      %v258 = vld [vmem:[%s2 + $0x8] sm:$0xf]
      %v259 = vld [vmem:[%s2 + $0xc] sm:$0xf]
      %v260 = vld [vmem:[%s2 + $0x10] sm:$0xf]
      %v261 = vld [vmem:[%s2 + $0x14] sm:$0xf]
      %v262 = vld [vmem:[%s2 + $0x18] sm:$0xf]
      %v263 = vld [vmem:[%s2 + $0x1c] sm:$0xf]
      %v264 = vld [vmem:[%s2 + $0x20] sm:$0xf]
      %v265 = vld [vmem:[%s2 + $0x24] sm:$0xf]
      %v266 = vld [vmem:[%s2 + $0x28] sm:$0xf]
      %v267 = vld [vmem:[%s2 + $0x2c] sm:$0xf]
      %v268 = vld [vmem:[%s2 + $0x30] sm:$0xf]
      %v269 = vld [vmem:[%s2 + $0x34] sm:$0xf]
      %v270 = vld [vmem:[%s2 + $0x38] sm:$0xf]
      %v271 = vld [vmem:[%s2 + $0x3c] sm:$0xf]
      %v288 = vunpack.c.l.b16 %v256
      %v289 = vunpack.c.l.b16 %v257
      %v290 = vunpack.c.l.b16 %v258
      %v291 = vunpack.c.l.b16 %v259
      %v292 = vunpack.c.l.b16 %v260
      %v293 = vunpack.c.l.b16 %v261
      %v294 = vunpack.c.l.b16 %v262
      %v295 = vunpack.c.l.b16 %v263
      %v296 = vunpack.c.l.b16 %v264
      %v297 = vunpack.c.l.b16 %v265
      %v298 = vunpack.c.l.b16 %v266
      %v299 = vunpack.c.l.b16 %v267
      %v300 = vunpack.c.l.b16 %v268
      %v301 = vunpack.c.l.b16 %v269
      %v302 = vunpack.c.l.b16 %v270
      %v303 = vunpack.c.l.b16 %v271
      %v304 = vpack.c.b16 %v289, %v288
      %v305 = vpack.c.b16 %v291, %v290
      %v306 = vpack.c.b16 %v293, %v292
      %v307 = vpack.c.b16 %v295, %v294
      %v308 = vpack.c.b16 %v297, %v296
      %v309 = vpack.c.b16 %v299, %v298
      %v310 = vpack.c.b16 %v301, %v300
      %v311 = vpack.c.b16 %v303, %v302
      %320 = vmatprep.subr.bf16.mxu0 0
      %321 = vmatpush1.bf16.msra.mxu0 %v304
      %322 = vmatprep.subr.bf16.mxu0 0
      %323 = vmatpush1.bf16.msra.mxu0 %v305
      %324 = vmatprep.subr.bf16.mxu0 0
      %325 = vmatpush1.bf16.msra.mxu0 %v306
      %326 = vmatprep.subr.bf16.mxu0 0
      %327 = vmatpush1.bf16.msra.mxu0 %v307
      %328 = vmatprep.subr.bf16.mxu0 0
      %329 = vmatpush1.bf16.msra.mxu0 %v308
      %330 = vmatprep.subr.bf16.mxu0 0
      %331 = vmatpush1.bf16.msra.mxu0 %v309
      %332 = vmatprep.subr.bf16.mxu0 0
      %333 = vmatpush1.bf16.msra.mxu0 %v310
      %334 = vmatprep.subr.bf16.mxu0 0
      %335 = vmatpush1.bf16.msra.mxu0 %v311
      %336 = vmatprep.subr.bf16.mxu0 0
      %337 = vmatpush1.bf16.msra.mxu0 0
      %338 = vmatprep.subr.bf16.mxu0 0
      %339 = vmatpush1.bf16.msra.mxu0 0
      %340 = vmatprep.subr.bf16.mxu0 0
      %341 = vmatpush1.bf16.msra.mxu0 0
      %342 = vmatprep.subr.bf16.mxu0 0
      %343 = vmatpush1.bf16.msra.mxu0 0
      %344 = vmatprep.subr.bf16.mxu0 0
      %345 = vmatpush1.bf16.msra.mxu0 0
      %346 = vmatprep.subr.bf16.mxu0 0
      %347 = vmatpush1.bf16.msra.mxu0 0
      %348 = vmatprep.subr.bf16.mxu0 0
      %349 = vmatpush1.bf16.msra.mxu0 0
      %350 = vmatprep.subr.bf16.mxu0 0
      %351 = vmatpush1.bf16.msra.mxu0 0
      %352 = vmatprep.mubr.bf16.mxu0 0
      %353 = vmatmul.mubr.bf16.gmra.mrb[0].mxu0 %v248
      %v354 = vpop.f32.mrb[0].mxu0
      %v355 = vadd.f32 0.0, %v354
      %v356 = vpop.f32.mrb[0].mxu0
      %v357 = vpop.f32.mrb[0].mxu0
      %v358 = vpop.f32.mrb[0].mxu0
      %359 = vdwg.mxu0
      %v360 = vld [vmem:[%s3] sm:$0xf]
      %v361 = vld [vmem:[%s3 + $0x4] sm:$0xf]
      %v362 = vld [vmem:[%s3 + $0x8] sm:$0xf]
      %v363 = vld [vmem:[%s3 + $0xc] sm:$0xf]
      %v364 = vld [vmem:[%s3 + $0x10] sm:$0xf]
      %v365 = vld [vmem:[%s3 + $0x14] sm:$0xf]
      %v366 = vld [vmem:[%s3 + $0x18] sm:$0xf]
      %v367 = vld [vmem:[%s3 + $0x1c] sm:$0xf]
      %v368 = vld [vmem:[%s3 + $0x20] sm:$0xf]
      %v369 = vld [vmem:[%s3 + $0x24] sm:$0xf]
      %v370 = vld [vmem:[%s3 + $0x28] sm:$0xf]
      %v371 = vld [vmem:[%s3 + $0x2c] sm:$0xf]
      %v372 = vld [vmem:[%s3 + $0x30] sm:$0xf]
      %v373 = vld [vmem:[%s3 + $0x34] sm:$0xf]
      %v374 = vld [vmem:[%s3 + $0x38] sm:$0xf]
      %v375 = vld [vmem:[%s3 + $0x3c] sm:$0xf]
      %v392 = vunpack.c.l.b16 %v360
      %v393 = vunpack.c.l.b16 %v361
      %v394 = vunpack.c.l.b16 %v362
      %v395 = vunpack.c.l.b16 %v363
      %v396 = vunpack.c.l.b16 %v364
      %v397 = vunpack.c.l.b16 %v365
      %v398 = vunpack.c.l.b16 %v366
      %v399 = vunpack.c.l.b16 %v367
      %v400 = vunpack.c.l.b16 %v368
      %v401 = vunpack.c.l.b16 %v369
      %v402 = vunpack.c.l.b16 %v370
      %v403 = vunpack.c.l.b16 %v371
      %v404 = vunpack.c.l.b16 %v372
      %v405 = vunpack.c.l.b16 %v373
      %v406 = vunpack.c.l.b16 %v374
      %v407 = vunpack.c.l.b16 %v375
      %v408 = vpack.c.b16 %v393, %v392
      %v409 = vpack.c.b16 %v395, %v394
      %v410 = vpack.c.b16 %v397, %v396
      %v411 = vpack.c.b16 %v399, %v398
      %v412 = vpack.c.b16 %v401, %v400
      %v413 = vpack.c.b16 %v403, %v402
      %v414 = vpack.c.b16 %v405, %v404
      %v415 = vpack.c.b16 %v407, %v406
      %424 = vmatprep.subr.bf16.mxu0 0
      %425 = vmatpush1.bf16.msra.mxu0 %v408
      %426 = vmatprep.subr.bf16.mxu0 0
      %427 = vmatpush1.bf16.msra.mxu0 %v409
      %428 = vmatprep.subr.bf16.mxu0 0
      %429 = vmatpush1.bf16.msra.mxu0 %v410
      %430 = vmatprep.subr.bf16.mxu0 0
      %431 = vmatpush1.bf16.msra.mxu0 %v411
      %432 = vmatprep.subr.bf16.mxu0 0
      %433 = vmatpush1.bf16.msra.mxu0 %v412
      %434 = vmatprep.subr.bf16.mxu0 0
      %435 = vmatpush1.bf16.msra.mxu0 %v413
      %436 = vmatprep.subr.bf16.mxu0 0
      %437 = vmatpush1.bf16.msra.mxu0 %v414
      %438 = vmatprep.subr.bf16.mxu0 0
      %439 = vmatpush1.bf16.msra.mxu0 %v415
      %440 = vmatprep.subr.bf16.mxu0 0
      %441 = vmatpush1.bf16.msra.mxu0 0
      %442 = vmatprep.subr.bf16.mxu0 0
      %443 = vmatpush1.bf16.msra.mxu0 0
      %444 = vmatprep.subr.bf16.mxu0 0
      %445 = vmatpush1.bf16.msra.mxu0 0
      %446 = vmatprep.subr.bf16.mxu0 0
      %447 = vmatpush1.bf16.msra.mxu0 0
      %448 = vmatprep.subr.bf16.mxu0 0
      %449 = vmatpush1.bf16.msra.mxu0 0
      %450 = vmatprep.subr.bf16.mxu0 0
      %451 = vmatpush1.bf16.msra.mxu0 0
      %452 = vmatprep.subr.bf16.mxu0 0
      %453 = vmatpush1.bf16.msra.mxu0 0
      %454 = vmatprep.subr.bf16.mxu0 0
      %455 = vmatpush1.bf16.msra.mxu0 0
      %456 = vmatprep.mubr.bf16.mxu0 0
      %457 = vmatmul.mubr.bf16.gmra.mrb[0].mxu0 %v255
      %v458 = vpop.f32.mrb[0].mxu0
      %v459 = vadd.f32 0.0, %v458
      %v460 = vpop.f32.mrb[0].mxu0
      %v461 = vpop.f32.mrb[0].mxu0
      %v462 = vpop.f32.mrb[0].mxu0
      %463 = vdwg.mxu0
      %465 = vset.pattern.permute.xlu0 1
      %466 = vperm.xlu0 %465, %v239
      %v467 = vpop.permute.xlu0 %466
      %v469 = vmul.f32 %v355, %v467
      %v470 = vadd.f32 %v469, %v459
      %471 = vadd.xlane.f32.xlu0 %v470
      %v472 = vpop.xlane.xlu0 %471
      %v473 = vmul.f32 %v472, 0.03125
      %v474 = vmul.f32 %v470, %v470
      %475 = vadd.xlane.f32.xlu0 %v474
      %v476 = vpop.xlane.xlu0 %475
      %v477 = vmul.f32 %v476, 0.03125
      %v478 = vmul.f32 %v473, %v473
      %v479 = vsub.f32 %v477, %v478
      %v480 = vmax.f32 %v479, 0.0
      %v481 = vadd.f32 %v480, 1e-12
      %v482 = vrsqrt.pop %v481
      %v483 = vld [vmem:[%s4] sm:$0x1]
      %v484 = vld [vmem:[%s4 + $0x1] sm:$0x1]
      %v485 = vsub.f32 %v470, %v473
      %v486 = vmul.f32 %v485, %v482
      %v487 = vlaneseq
      %v488 = vshrl.u32 %v487, 7
      %v489 = vsub.s32 0, %v488
      %v490 = vrot.slane %v483, %v489
      %v491 = vmul.f32 %v486, %v490
      %v492 = vlaneseq
      %v493 = vshrl.u32 %v492, 7
      %v494 = vsub.s32 0, %v493
      %v495 = vrot.slane %v484, %v494
      %v496 = vadd.f32 %v491, %v495
      %497 = vset.pattern.permute.xlu0 0
      %498 = vperm.xlu0 %497, %v239
      %v499 = vpop.permute.xlu0 %498
      %v501 = vmul.f32 %v496, %v499
      %502 = vst [vmem:[%s236] sm:$0xff] %v501
      %p503 = scmp.lt.s32.totalorder %s16, 1
      %s504 = scalar_select %p503, %s16, 1
      %s505 = smul.addr %s504, 8
      %s506 = scalar_lea.vmem %s5, %s505
      // Predicated region
      $region41: #{esm_embeddings.1} parent=39 // pred_check
        %p507 = pneg %p149
      $region42: #{esm_embeddings.1} parent=39 // pred_check_branch
        %509 = sbr.rel (%p507) target = $region44
      $region43: #{esm_embeddings.1} parent=39 // pred_region
        _
      $region44: #{esm_embeddings.1} parent=39 // pred_fallthru
        _
    $region40: #{esm_embeddings.1} parent=5 // pred_fallthru
      _
    %p510 = scmp.le.s32.totalorder 2, %s11
    // Predicated region
    $region45: #{esm_embeddings.1} parent=5 // pred_check
      %p511 = pneg %p510
    $region46: #{esm_embeddings.1} parent=5 // pred_check_branch
      %513 = sbr.rel (%p511) target = $region48
    $region47: #{esm_embeddings.1} parent=5 // pred_region
      %s514 = ssub.s32 %s11, 2
      // Predicated region
      $region49: #{esm_embeddings.1} parent=47 // pred_check
        %p515 = pneg %p155
      $region50: #{esm_embeddings.1} parent=47 // pred_check_branch
        %517 = sbr.rel (%p515) target = $region52
      $region51: #{esm_embeddings.1} parent=47 // pred_region
        %p518 = scmp.lt.s32.totalorder %s17, 1
        %s519 = scalar_select %p518, %s17, 1
        %s520 = smul.addr %s519, 8
        %s521 = scalar_lea.vmem %s5, %s520
      $region52: #{esm_embeddings.1} parent=47 // pred_fallthru
        _
    $region48: #{esm_embeddings.1} parent=5 // pred_fallthru
      _
  $region6: #{esm_embeddings.1} parent=0 // loop_footer
    %s15 = sadd.s32 1, %s11
  $region7: #{esm_embeddings.1} parent=0 // loop_footer_branch
    %10 = sbr.rel target = $region3
  $region8: #{esm_embeddings.1} parent=0 // loop_exit
    _

</llo_original>
